<compile_context>
chip_gen: v7x
topology: tpu7x:2x2x1
jax: 0.10.0
libtpu: 0.0.40
codegen_flags: <defaults>
</compile_context>

<pallas_src>
import functools

import jax
import jax.numpy as jnp
from jax.experimental import pallas as pl
from jax.experimental.pallas import tpu as pltpu


def mlp_kernel(x_ref, w1_ref, b1_ref, w2_ref, b2_ref, o_ref):
    # Hidden layer: x @ W1 + b1 -> sigmoid.  Dot operands in the (possibly bf16)
    # weight dtype, accumulation in f32; elementwise math stays in f32
    # (v5e VPU/EUP have no bf16 path).
    x = x_ref[...].astype(w1_ref.dtype)
    h = jnp.dot(x, w1_ref[...], preferred_element_type=jnp.float32)
    h = jax.nn.sigmoid(h + b1_ref[...])            # b1 is (1, n_hidden), broadcasts
    # Output layer: h @ W2 + b2.
    y = jnp.dot(h.astype(w2_ref.dtype), w2_ref[...],
                preferred_element_type=jnp.float32)
    o_ref[...] = (y + b2_ref[...]).astype(o_ref.dtype)


def prepare_params(w1, b1, w2, b2, compute_dtype=jnp.float32):
    """One-time layout glue: PyTorch [out, in] weights -> [in, out]; biases -> (1, N).

    Call at parameter-init time (not per forward) so no transpose/reshape HLOs land
    on the per-call path.  compute_dtype=jnp.bfloat16 halves weight HBM/VMEM traffic
    on v6e/v7x; biases stay f32 (f32 accumulation + f32 elementwise).
    """
    return (
        jnp.asarray(w1.T, dtype=compute_dtype),             # [n_in, n_hidden]
        jnp.asarray(b1, dtype=jnp.float32).reshape(1, -1),   # [1, n_hidden]
        jnp.asarray(w2.T, dtype=compute_dtype),             # [n_hidden, n_out]
        jnp.asarray(b2, dtype=jnp.float32).reshape(1, -1),   # [1, n_out]
    )


@functools.partial(jax.jit, static_argnames=("block_batch",))
def nn_model_forward(x, params, *, block_batch=1024):
    """x: [B, n_in] (same layout as PyTorch nn.Linear input); params from prepare_params."""
    w1_t, b1_2d, w2_t, b2_2d = params
    B, n_in = x.shape
    n_hidden = w1_t.shape[1]
    n_out = w2_t.shape[1]
    out_shape = jax.ShapeDtypeStruct((B, n_out), x.dtype)

    if B <= block_batch:
        # Small problem: single invocation, every operand is one whole-array VMEM
        # block — no grid / pipeline overhead, single-buffered.
        vmem = pl.BlockSpec(memory_space=pltpu.MemorySpace.VMEM)
        return pl.pallas_call(
            mlp_kernel,
            out_shape=out_shape,
            in_specs=[vmem, vmem, vmem, vmem, vmem],
            out_specs=vmem,
        )(x, w1_t, b1_2d, w2_t, b2_2d)

    # Large batch: tile the batch axis.  Weights/biases keep a constant (0,0) block
    # index so they stay VMEM-resident across grid steps; only x and the output
    # stream from HBM.  "parallel" lets the runtime shard batch tiles across
    # TensorCores (2 TCs on v7x).
    bm = block_batch
    return pl.pallas_call(
        mlp_kernel,
        out_shape=out_shape,
        grid_spec=pl.GridSpec(
            grid=(pl.cdiv(B, bm),),
            in_specs=[
                pl.BlockSpec((bm, n_in), lambda i: (i, 0)),
                pl.BlockSpec((n_in, n_hidden), lambda i: (0, 0)),
                pl.BlockSpec((1, n_hidden), lambda i: (0, 0)),
                pl.BlockSpec((n_hidden, n_out), lambda i: (0, 0)),
                pl.BlockSpec((1, n_out), lambda i: (0, 0)),
            ],
            out_specs=pl.BlockSpec((bm, n_out), lambda i: (i, 0)),
        ),
        compiler_params=pltpu.CompilerParams(
            dimension_semantics=("parallel",),
            # Sized for v7x (64 MiB physical VMEM): double-buffered x/out tiles plus
            # resident weights stay far below this for bm<=1024 at these feature dims.
            vmem_limit_bytes=32 << 20,
        ),
    )(x, w1_t, b1_2d, w2_t, b2_2d)


def reference_forward(x, w1, b1, w2, b2):
    h = jax.nn.sigmoid(x @ w1.T + b1)
    return h @ w2.T + b2


if __name__ == "__main__":
    # Shapes consistent with the module: n_input=16, n_hidden=8, n_output=4.
    n_input, n_hidden, n_output = 16, 8, 4

    key = jax.random.PRNGKey(0)
    k_x, k_xl, k_w1, k_b1, k_w2, k_b2 = jax.random.split(key, 6)

    # PyTorch Linear layout: weight [out, in], bias [out].
    w1 = jax.random.normal(k_w1, (n_hidden, n_input), dtype=jnp.float32) * 0.1
    b1 = jax.random.normal(k_b1, (n_hidden,), dtype=jnp.float32) * 0.1
    w2 = jax.random.normal(k_w2, (n_output, n_hidden), dtype=jnp.float32) * 0.1
    b2 = jax.random.normal(k_b2, (n_output,), dtype=jnp.float32) * 0.1

    # One-time param prep (f32 compute here so the f32 reference check is tight;
    # pass compute_dtype=jnp.bfloat16 on v6e/v7x for bandwidth).
    params = prepare_params(w1, b1, w2, b2, compute_dtype=jnp.float32)

    # --- Small batch: no-grid, whole-arrays-in-VMEM path ---
    B_small = 8
    x_small = jax.random.normal(k_x, (B_small, n_input), dtype=jnp.float32)
    out_small = jax.block_until_ready(nn_model_forward(x_small, params))
    ref_small = reference_forward(x_small, w1, b1, w2, b2)
    assert out_small.shape == (B_small, n_output)
    assert jnp.allclose(out_small, ref_small, atol=1e-5, rtol=1e-5), "small-batch mismatch"

    # --- Larger batch: batch-tiled 'parallel' grid with resident weights ---
    B_large = 256
    x_large = jax.random.normal(k_xl, (B_large, n_input), dtype=jnp.float32)
    out_large = jax.block_until_ready(
        nn_model_forward(x_large, params, block_batch=128))
    ref_large = reference_forward(x_large, w1, b1, w2, b2)
    assert out_large.shape == (B_large, n_output)
    assert jnp.allclose(out_large, ref_large, atol=1e-5, rtol=1e-5), "large-batch mismatch"

    print("KERNEL_OK")
</pallas_src>

<mosaic_0001>
module attributes {stable_mosaic.version = 11 : i64} {
  func.func @mlp_kernel(%arg0: memref<8x16xf32, #tpu.memory_space<vmem>>, %arg1: memref<16x8xf32, #tpu.memory_space<vmem>>, %arg2: memref<1x8xf32, #tpu.memory_space<vmem>>, %arg3: memref<8x4xf32, #tpu.memory_space<vmem>>, %arg4: memref<1x4xf32, #tpu.memory_space<vmem>>, %arg5: memref<8x4xf32, #tpu.memory_space<vmem>>) attributes {dimension_semantics = [], scalar_prefetch = 0 : i64, scratch_operands = 0 : i64, tpu.core_type = #tpu.core_type<tc>} {
    %c0 = arith.constant 0 : index
    %c0_0 = arith.constant 0 : index
    %0 = vector.load %arg0[%c0, %c0_0] : memref<8x16xf32, #tpu.memory_space<vmem>>, vector<8x16xf32>
    %c0_1 = arith.constant 0 : index
    %c0_2 = arith.constant 0 : index
    %1 = vector.load %arg1[%c0_1, %c0_2] : memref<16x8xf32, #tpu.memory_space<vmem>>, vector<16x8xf32>
    %cst = arith.constant dense<0.000000e+00> : vector<8x8xf32>
    %2 = tpu.matmul %0, %1, %cst {dimension_numbers = #tpu.dot_dimension_numbers<[1], [0], [0], [1], [0, 0, 1, 1], [], []>} : vector<8x16xf32>, vector<16x8xf32>, vector<8x8xf32> -> vector<8x8xf32>
    %c0_3 = arith.constant 0 : index
    %c0_4 = arith.constant 0 : index
    %3 = vector.load %arg2[%c0_3, %c0_4] : memref<1x8xf32, #tpu.memory_space<vmem>>, vector<1x8xf32>
    %4 = vector.broadcast %3 : vector<1x8xf32> to vector<8x8xf32>
    %5 = arith.addf %2, %4 : vector<8x8xf32>
    %6 = arith.negf %5 : vector<8x8xf32>
    %7 = math.exp %6 : vector<8x8xf32>
    %cst_5 = arith.constant 1.000000e+00 : f32
    %8 = vector.broadcast %cst_5 : f32 to vector<8x8xf32>
    %9 = arith.addf %8, %7 : vector<8x8xf32>
    %10 = arith.divf %8, %9 : vector<8x8xf32>
    %c0_6 = arith.constant 0 : index
    %c0_7 = arith.constant 0 : index
    %11 = vector.load %arg3[%c0_6, %c0_7] : memref<8x4xf32, #tpu.memory_space<vmem>>, vector<8x4xf32>
    %cst_8 = arith.constant dense<0.000000e+00> : vector<8x4xf32>
    %12 = tpu.matmul %10, %11, %cst_8 {dimension_numbers = #tpu.dot_dimension_numbers<[1], [0], [0], [1], [0, 0, 1, 1], [], []>} : vector<8x8xf32>, vector<8x4xf32>, vector<8x4xf32> -> vector<8x4xf32>
    %c0_9 = arith.constant 0 : index
    %c0_10 = arith.constant 0 : index
    %13 = vector.load %arg4[%c0_9, %c0_10] : memref<1x4xf32, #tpu.memory_space<vmem>>, vector<1x4xf32>
    %14 = vector.broadcast %13 : vector<1x4xf32> to vector<8x4xf32>
    %15 = arith.addf %12, %14 : vector<8x4xf32>
    %c0_11 = arith.constant 0 : index
    %c0_12 = arith.constant 0 : index
    %16 = vector.load %arg5[%c0_11, %c0_12] : memref<8x4xf32, #tpu.memory_space<vmem>>, vector<8x4xf32>
    tpu.vector_store %arg5[%c0_11, %c0_12], %15 {strides = array<i32>} : memref<8x4xf32, #tpu.memory_space<vmem>>, vector<8x4xf32>,
    return
  }
}

</mosaic_0001>

<llo_original>
// kernel: nn_model_forward.1
$region0: #{nn_model_forward.1}
  #allocation0 [shape = 'u32[]', space=smem, size = 0x4, offset = 0x4, fixed_abs, tag = 'smem constant byte address 0x4 - core index']
  #allocation1 [shape = 'u32[144,128]{1,0:T(1,128)}', space=vmem, size = 0x12000, scoped, tag = 'internal scratch']
  %s0 = inlined_call_operand.vmem [shape: f32[8,16], index: 0, kind: input, shape index: {}]
  %s1 = inlined_call_operand.vmem [shape: f32[16,8], index: 1, kind: input, shape index: {}]
  %s2 = inlined_call_operand.vmem [shape: f32[1,8], index: 2, kind: input, shape index: {}]
  %s3 = inlined_call_operand.vmem [shape: f32[8,4], index: 3, kind: input, shape index: {}]
  %s4 = inlined_call_operand.vmem [shape: f32[1,4], index: 4, kind: input, shape index: {}]
  %s5 = inlined_call_operand.vmem [shape: f32[8,4], index: 5, kind: output, shape index: {}]
  %s6 = sld [smem:[#allocation0]]
  $region30: #{nn_model_forward.1} parent=0
    _
  %s8 = ssub.s32 1, %s6
  %s9 = scalar_select 0, %s8, %s6
  // Predicated region
  $region2: #{nn_model_forward.1} parent=0 // pred_check
    _
  $region3: #{nn_model_forward.1} parent=0 // pred_check_branch
    %11 = sbr.rel (0) target = $region5
  $region4: #{nn_model_forward.1} parent=0 // pred_region
    _
  $region5: #{nn_model_forward.1} parent=0 // pred_fallthru
    _
  // Predicated region
  $region6: #{nn_model_forward.1} parent=0 // pred_check
    _
  $region7: #{nn_model_forward.1} parent=0 // pred_check_branch
    %13 = sbr.rel (0) target = $region9
  $region8: #{nn_model_forward.1} parent=0 // pred_region
    _
  $region9: #{nn_model_forward.1} parent=0 // pred_fallthru
    _
  // Predicated region
  $region10: #{nn_model_forward.1} parent=0 // pred_check
    _
  $region11: #{nn_model_forward.1} parent=0 // pred_check_branch
    %15 = sbr.rel (0) target = $region13
  $region12: #{nn_model_forward.1} parent=0 // pred_region
    _
  $region13: #{nn_model_forward.1} parent=0 // pred_fallthru
    _
  // Predicated region
  $region14: #{nn_model_forward.1} parent=0 // pred_check
    _
  $region15: #{nn_model_forward.1} parent=0 // pred_check_branch
    %17 = sbr.rel (0) target = $region17
  $region16: #{nn_model_forward.1} parent=0 // pred_region
    _
  $region17: #{nn_model_forward.1} parent=0 // pred_fallthru
    _
  // Predicated region
  $region18: #{nn_model_forward.1} parent=0 // pred_check
    _
  $region19: #{nn_model_forward.1} parent=0 // pred_check_branch
    %19 = sbr.rel (0) target = $region21
  $region20: #{nn_model_forward.1} parent=0 // pred_region
    _
  $region21: #{nn_model_forward.1} parent=0 // pred_fallthru
    _
  %v20 = vld [vmem:[%s0] sm:$0xff]
  %v21 = vld [vmem:[%s1] sm:$0xff]
  %v22 = vld [vmem:[%s1 + $0x8] sm:$0xff]
  %v23 = vld [vmem:[%s2] sm:$0x1]
  %v25 = vlaneseq
  %v26 = vshrl.u32 %v25, 7
  %v27 = vsub.s32 0, %v26
  %v28 = vrot.slane %v23, %v27
  %vm30 = vcmask 130048
  %v32 = vsel %vm30, %v20, 0
  %34 = vmatprep.subr.mxu0 0.0
  %35 = vmatpush1.msra.mxu0 %v21
  %36 = vmatprep.subr.mxu0 0.0
  %37 = vmatpush1.msra.mxu0 %v22
  %38 = vmatprep.subr.mxu0 0.0
  %39 = vmatpush1.msra.mxu0 0.0
  %40 = vmatprep.subr.mxu0 0.0
  %41 = vmatpush1.msra.mxu0 0.0
  %42 = vmatprep.subr.mxu0 0.0
  %43 = vmatpush1.msra.mxu0 0.0
  %44 = vmatprep.subr.mxu0 0.0
  %45 = vmatpush1.msra.mxu0 0.0
  %46 = vmatprep.subr.mxu0 0.0
  %47 = vmatpush1.msra.mxu0 0.0
  %48 = vmatprep.subr.mxu0 0.0
  %49 = vmatpush1.msra.mxu0 0.0
  %50 = vmatprep.subr.mxu0 0.0
  %51 = vmatpush1.msra.mxu0 0.0
  %52 = vmatprep.subr.mxu0 0.0
  %53 = vmatpush1.msra.mxu0 0.0
  %54 = vmatprep.subr.mxu0 0.0
  %55 = vmatpush1.msra.mxu0 0.0
  %56 = vmatprep.subr.mxu0 0.0
  %57 = vmatpush1.msra.mxu0 0.0
  %58 = vmatprep.subr.mxu0 0.0
  %59 = vmatpush1.msra.mxu0 0.0
  %60 = vmatprep.subr.mxu0 0.0
  %61 = vmatpush1.msra.mxu0 0.0
  %62 = vmatprep.subr.mxu0 0.0
  %63 = vmatpush1.msra.mxu0 0.0
  %64 = vmatprep.subr.mxu0 0.0
  %65 = vmatpush1.msra.mxu0 0.0
  %66 = vmatprep.subr.mxu0 0.0
  %67 = vmatpush1.msra.mxu0 0.0
  %68 = vmatprep.subr.mxu0 0.0
  %69 = vmatpush1.msra.mxu0 0.0
  %70 = vmatprep.subr.mxu0 0.0
  %71 = vmatpush1.msra.mxu0 0.0
  %72 = vmatprep.subr.mxu0 0.0
  %73 = vmatpush1.msra.mxu0 0.0
  %74 = vmatprep.subr.mxu0 0.0
  %75 = vmatpush1.msra.mxu0 0.0
  %76 = vmatprep.subr.mxu0 0.0
  %77 = vmatpush1.msra.mxu0 0.0
  %78 = vmatprep.subr.mxu0 0.0
  %79 = vmatpush1.msra.mxu0 0.0
  %80 = vmatprep.subr.mxu0 0.0
  %81 = vmatpush1.msra.mxu0 0.0
  %82 = vmatprep.subr.mxu0 0.0
  %83 = vmatpush1.msra.mxu0 0.0
  %84 = vmatprep.subr.mxu0 0.0
  %85 = vmatpush1.msra.mxu0 0.0
  %86 = vmatprep.subr.mxu0 0.0
  %87 = vmatpush1.msra.mxu0 0.0
  %88 = vmatprep.subr.mxu0 0.0
  %89 = vmatpush1.msra.mxu0 0.0
  %90 = vmatprep.subr.mxu0 0.0
  %91 = vmatpush1.msra.mxu0 0.0
  %92 = vmatprep.subr.mxu0 0.0
  %93 = vmatpush1.msra.mxu0 0.0
  %94 = vmatprep.subr.mxu0 0.0
  %95 = vmatpush1.msra.mxu0 0.0
  %96 = vmatprep.subr.mxu0 0.0
  %97 = vmatpush1.msra.mxu0 0.0
  %98 = vmatprep.mubr.f32.mxu0 0.0
  %99 = vmatmul.mubr.f32.gmra.mrb[0].mxu0 %v32
  %v100 = vpop.f32.mrb[0].mxu0
  %v101 = vadd.f32 %v28, %v100
  %v102 = vpop.f32.mrb[0].mxu0
  %103 = vdwg.mxu0
  %v104 = vxor.u32 %v101, 2147483648
  %v105 = vmul.f32 %v104, 1.442695
  %v106 = vpow.pop %v105
  %v107 = vadd.f32 %v106, 1.0
  %v108 = vrcp.pop %v107
  %v109 = vmul.f32 1.0, %v108
  %v110 = vld [vmem:[%s3] sm:$0xff]
  %v111 = vld [vmem:[%s4] sm:$0x1]
  %v113 = vlaneseq
  %v114 = vshrl.u32 %v113, 7
  %v115 = vsub.s32 0, %v114
  %v116 = vrot.slane %v111, %v115
  %vm118 = vcmask 64512
  %v120 = vsel %vm118, %v109, 0
  %122 = vmatprep.subr.mxu0 0.0
  %123 = vmatpush1.msra.mxu0 %v110
  %124 = vmatprep.subr.mxu0 0.0
  %125 = vmatpush1.msra.mxu0 0.0
  %126 = vmatprep.subr.mxu0 0.0
  %127 = vmatpush1.msra.mxu0 0.0
  %128 = vmatprep.subr.mxu0 0.0
  %129 = vmatpush1.msra.mxu0 0.0
  %130 = vmatprep.subr.mxu0 0.0
  %131 = vmatpush1.msra.mxu0 0.0
  %132 = vmatprep.subr.mxu0 0.0
  %133 = vmatpush1.msra.mxu0 0.0
  %134 = vmatprep.subr.mxu0 0.0
  %135 = vmatpush1.msra.mxu0 0.0
  %136 = vmatprep.subr.mxu0 0.0
  %137 = vmatpush1.msra.mxu0 0.0
  %138 = vmatprep.subr.mxu0 0.0
  %139 = vmatpush1.msra.mxu0 0.0
  %140 = vmatprep.subr.mxu0 0.0
  %141 = vmatpush1.msra.mxu0 0.0
  %142 = vmatprep.subr.mxu0 0.0
  %143 = vmatpush1.msra.mxu0 0.0
  %144 = vmatprep.subr.mxu0 0.0
  %145 = vmatpush1.msra.mxu0 0.0
  %146 = vmatprep.subr.mxu0 0.0
  %147 = vmatpush1.msra.mxu0 0.0
  %148 = vmatprep.subr.mxu0 0.0
  %149 = vmatpush1.msra.mxu0 0.0
  %150 = vmatprep.subr.mxu0 0.0
  %151 = vmatpush1.msra.mxu0 0.0
  %152 = vmatprep.subr.mxu0 0.0
  %153 = vmatpush1.msra.mxu0 0.0
  %154 = vmatprep.subr.mxu0 0.0
  %155 = vmatpush1.msra.mxu0 0.0
  %156 = vmatprep.subr.mxu0 0.0
  %157 = vmatpush1.msra.mxu0 0.0
  %158 = vmatprep.subr.mxu0 0.0
  %159 = vmatpush1.msra.mxu0 0.0
  %160 = vmatprep.subr.mxu0 0.0
  %161 = vmatpush1.msra.mxu0 0.0
  %162 = vmatprep.subr.mxu0 0.0
  %163 = vmatpush1.msra.mxu0 0.0
  %164 = vmatprep.subr.mxu0 0.0
  %165 = vmatpush1.msra.mxu0 0.0
  %166 = vmatprep.subr.mxu0 0.0
  %167 = vmatpush1.msra.mxu0 0.0
  %168 = vmatprep.subr.mxu0 0.0
  %169 = vmatpush1.msra.mxu0 0.0
  %170 = vmatprep.subr.mxu0 0.0
  %171 = vmatpush1.msra.mxu0 0.0
  %172 = vmatprep.subr.mxu0 0.0
  %173 = vmatpush1.msra.mxu0 0.0
  %174 = vmatprep.subr.mxu0 0.0
  %175 = vmatpush1.msra.mxu0 0.0
  %176 = vmatprep.subr.mxu0 0.0
  %177 = vmatpush1.msra.mxu0 0.0
  %178 = vmatprep.subr.mxu0 0.0
  %179 = vmatpush1.msra.mxu0 0.0
  %180 = vmatprep.subr.mxu0 0.0
  %181 = vmatpush1.msra.mxu0 0.0
  %182 = vmatprep.subr.mxu0 0.0
  %183 = vmatpush1.msra.mxu0 0.0
  %184 = vmatprep.subr.mxu0 0.0
  %185 = vmatpush1.msra.mxu0 0.0
  %186 = vmatprep.mubr.f32.mxu0 0.0
  %187 = vmatmul.mubr.f32.gmra.mrb[0].mxu0 %v120
  %v188 = vpop.f32.mrb[0].mxu0
  %v189 = vadd.f32 %v116, %v188
  %v190 = vpop.f32.mrb[0].mxu0
  %191 = vdwg.mxu0
  %vm192 = vcmask 31744
  %193 = vst.msk [vmem:[%s5] sm:$0xff] %vm192, %v189
  // Predicated region
  $region22: #{nn_model_forward.1} parent=0 // pred_check
    _
  $region23: #{nn_model_forward.1} parent=0 // pred_check_branch
    %195 = sbr.rel (0) target = $region25
  $region24: #{nn_model_forward.1} parent=0 // pred_region
    _
  $region25: #{nn_model_forward.1} parent=0 // pred_fallthru
    _
  // Predicated region
  $region26: #{nn_model_forward.1} parent=0 // pred_check
    _
  $region27: #{nn_model_forward.1} parent=0 // pred_check_branch
    %197 = sbr.rel (0) target = $region29
  $region28: #{nn_model_forward.1} parent=0 // pred_region
    _
  $region29: #{nn_model_forward.1} parent=0 // pred_fallthru
    _

</llo_original>
